<compile_context>
chip_gen: v7x
topology: tpu7x:2x2x1
jax: 0.10.0
libtpu: 0.0.40
codegen_flags: <defaults>
</compile_context>

<pallas_src>
import jax
import jax.numpy as jnp
from jax.experimental import pallas as pl
from jax.experimental.pallas import tpu as pltpu


def tmn_kernel(ids_ref,                      # SMEM (B, S) int32  (scalar prefetch)
               hid_ref,                      # VMEM (1, 1, H) f32 (this batch row)
               key_ref,                      # VMEM (V, T) f32
               val_ref,                      # VMEM (T, H) f32
               wsrc_ref,                     # VMEM (H, 1) f32  src_topic_dense.weight
               bsrc_ref,                     # VMEM (H, 1) f32  src_topic_dense.bias
               whsd_ref,                     # VMEM (H, H) f32  hidden_state_dense.weight^T
               bhsd_ref,                     # VMEM (1, H) f32  hidden_state_dense.bias
               wtgt_ref,                     # VMEM (H, H) f32  tgt_topic_dense.weight^T
               btgt_ref,                     # VMEM (1, H) f32  tgt_topic_dense.bias
               out_ref):                     # VMEM (1, 1, H) f32
    b = pl.program_id(0)
    S = ids_ref.shape[1]
    T = key_ref.shape[1]
    H = hid_ref.shape[2]

    hid = hid_ref[...].reshape(1, H)         # (1, H)

    # ---- embedding-bag gather: sum_s key_emb[ids[b, s], :]  + first-pad position ----
    def body(s, carry):
        acc, first_pad = carry
        tok = ids_ref[b, s]                                   # scalar int32 from SMEM
        acc = acc + key_ref[pl.ds(tok, 1), :]                 # (1, T) dynamic row gather
        first_pad = jnp.minimum(first_pad, jnp.where(tok == 0, s, S))
        return acc, first_pad

    emb_sum, first_pad = jax.lax.fori_loop(
        0, S, body, (jnp.zeros((1, T), jnp.float32), jnp.array(S, jnp.int32)))

    # ---- x = emb_sum / input_len (faithful to PyTorch: a leading pad -> len 0 -> inf) ----
    x = emb_sum * (1.0 / first_pad.astype(jnp.float32))       # (1, T), T on lanes

    # ---- src_topic_dense (Linear(1, H)) + tanh, built directly in (H, T) layout ----
    # topic_ht[h, t] = tanh(w_src[h] * x[t] + b_src[h])
    topic_ht = jnp.tanh(wsrc_ref[...] * x + bsrc_ref[...])    # (H,1)*(1,T)+(H,1) -> (H,T)

    # ---- hidden_state_dense + tanh ----
    hproj = jnp.tanh(
        jnp.dot(hid, whsd_ref[...], preferred_element_type=jnp.float32)
        + bhsd_ref[...])                                      # (1, H)

    # ---- topic scores + softmax (single MXU dot; no (T, H) broadcast materialized) ----
    scores = jnp.dot(hproj, topic_ht, preferred_element_type=jnp.float32)   # (1, T)
    m = jnp.max(scores, axis=1, keepdims=True)
    e = jnp.exp(scores - m)
    prob = e * pl.reciprocal(jnp.sum(e, axis=1, keepdims=True), approx=True)

    # ---- o = (prob @ val_emb) @ Wtgt + btgt  (reassociated; softmax rows sum to 1) ----
    pv = jnp.dot(prob, val_ref[...], preferred_element_type=jnp.float32)    # (1, H)
    o = jnp.dot(pv, wtgt_ref[...], preferred_element_type=jnp.float32) + btgt_ref[...]
    out_ref[...] = (o + hid).reshape(1, 1, H)


def tmn_forward(input_ids, hidden_state, key_emb, val_emb,
                w_src_t, b_src, w_hsd_t, b_hsd, w_tgt_t, b_tgt):
    B, S = input_ids.shape
    H = hidden_state.shape[-1]
    V, T = key_emb.shape

    ids = input_ids.astype(jnp.int32)
    hid3 = hidden_state.reshape(B, 1, H)        # blocks (1,1,H): last 2 dims == full dims
    wsrc_col = w_src_t.reshape(H, 1)            # Linear(1, H).weight natural layout
    bsrc_col = b_src.reshape(H, 1)

    grid_spec = pltpu.PrefetchScalarGridSpec(
        num_scalar_prefetch=1,                  # input_ids -> SMEM, read as scalars
        grid=(B,),                              # one batch row per grid step
        in_specs=[
            pl.BlockSpec((1, 1, H), lambda b, ids_smem: (b, 0, 0)),   # hidden row
            pl.BlockSpec((V, T),    lambda b, ids_smem: (0, 0)),      # key_emb (resident)
            pl.BlockSpec((T, H),    lambda b, ids_smem: (0, 0)),      # val_emb
            pl.BlockSpec((H, 1),    lambda b, ids_smem: (0, 0)),      # w_src (H,1)
            pl.BlockSpec((H, 1),    lambda b, ids_smem: (0, 0)),      # b_src (H,1)
            pl.BlockSpec((H, H),    lambda b, ids_smem: (0, 0)),      # w_hsd^T
            pl.BlockSpec((1, H),    lambda b, ids_smem: (0, 0)),      # b_hsd
            pl.BlockSpec((H, H),    lambda b, ids_smem: (0, 0)),      # w_tgt^T
            pl.BlockSpec((1, H),    lambda b, ids_smem: (0, 0)),      # b_tgt
        ],
        out_specs=pl.BlockSpec((1, 1, H), lambda b, ids_smem: (b, 0, 0)),
    )
    out3 = pl.pallas_call(
        tmn_kernel,
        out_shape=jax.ShapeDtypeStruct((B, 1, H), jnp.float32),
        grid_spec=grid_spec,
        compiler_params=pltpu.CompilerParams(
            dimension_semantics=("parallel",)),  # shard batch rows across TCs on v7x
    )(ids, hid3, key_emb, val_emb, wsrc_col, bsrc_col,
      w_hsd_t, b_hsd, w_tgt_t, b_tgt)
    return out3.reshape(B, H)


def tmn_reference(input_ids, hidden_state, key_emb, val_emb,
                  w_src_t, b_src, w_hsd_t, b_hsd, w_tgt_t, b_tgt):
    """Pure-JAX mirror of the PyTorch forward (topic_method=0) for checking."""
    B, S = input_ids.shape
    emb = key_emb[input_ids]                         # (B, S, T)
    emb_sum = emb.sum(axis=-2)                       # (B, T)
    iota_s = jnp.arange(S)[None, :]
    lens = jnp.min(jnp.where(input_ids == 0, iota_s, S), axis=1, keepdims=True)
    x = emb_sum / lens.astype(jnp.float32)           # (B, T)
    topic_out = jnp.tanh(x[:, :, None] * w_src_t[None] + b_src[None])   # (B,T,H)
    hproj = jnp.tanh(hidden_state @ w_hsd_t + b_hsd)                    # (B,H)
    scores = (topic_out * hproj[:, None, :]).sum(axis=2)                # (B,T)
    prob = jax.nn.softmax(scores, axis=1)
    tgt = val_emb @ w_tgt_t + b_tgt                                     # (T,H)
    o = prob @ tgt
    return o + hidden_state


if __name__ == "__main__":
    # Small, self-consistent shapes
    B, S = 2, 8          # batch, seq_len
    H = 32               # hidden_size
    T = 16               # topic_size
    V_raw = 50           # "loaded" topic-model vocab
    V = V_raw + 2        # two zero rows prepended (pad / unk)

    key = jax.random.PRNGKey(0)
    k1, k2, k3, k4, k5, k6, k7, k8, k9, k10 = jax.random.split(key, 10)

    # Deterministic synthetic "topic model" weight + embeddings / linears.
    w_raw = jax.random.normal(k1, (V_raw, T), dtype=jnp.float32) * 0.1
    key_emb = jnp.concatenate([jnp.zeros((2, T), jnp.float32), w_raw], axis=0)  # (V, T)
    val_emb = jax.random.normal(k2, (T, H), dtype=jnp.float32) * 0.1

    # Linear(1, H): weight (H,1) -> passed here transposed (1,H)
    w_src_t = (jax.random.normal(k3, (H, 1), jnp.float32) * 0.1).T            # (1, H)
    b_src = jax.random.normal(k4, (1, H), jnp.float32) * 0.1
    # Linear(H, H): weight (H,H) -> pass transposed (H,H)
    w_hsd_t = (jax.random.normal(k5, (H, H), jnp.float32) * 0.1).T
    b_hsd = jax.random.normal(k6, (1, H), jnp.float32) * 0.1
    w_tgt_t = (jax.random.normal(k7, (H, H), jnp.float32) * 0.1).T
    b_tgt = jax.random.normal(k8, (1, H), jnp.float32) * 0.1

    # Token ids in [2, V); pad tail of row 1 with zeros to exercise get_input_len().
    input_ids = jax.random.randint(k9, (B, S), 2, V, dtype=jnp.int32)
    input_ids = input_ids.at[1, 5:].set(0)   # row 1 has input_len = 5
    hidden_state = jax.random.normal(k10, (B, H), dtype=jnp.float32)

    out = tmn_forward(input_ids, hidden_state, key_emb, val_emb,
                      w_src_t, b_src, w_hsd_t, b_hsd, w_tgt_t, b_tgt)
    out = jax.block_until_ready(out)

    ref = tmn_reference(input_ids, hidden_state, key_emb, val_emb,
                        w_src_t, b_src, w_hsd_t, b_hsd, w_tgt_t, b_tgt)
    assert out.shape == (B, H)
    # 1e-4 tolerance: approx softmax reciprocal (~1e-4 rel) + reassociated final matmuls
    # change f32 rounding order vs the reference.
    assert jnp.allclose(out, ref, atol=1e-4, rtol=1e-4), "mismatch vs reference"

    print("KERNEL_OK")
</pallas_src>

<mosaic_0001>
module attributes {stable_mosaic.version = 11 : i64} {
  func.func @tmn_kernel(%arg0: i32, %arg1: memref<2x8xi32, #tpu.memory_space<smem>>, %arg2: memref<1x1x32xf32, #tpu.memory_space<vmem>>, %arg3: memref<52x16xf32, #tpu.memory_space<vmem>>, %arg4: memref<16x32xf32, #tpu.memory_space<vmem>>, %arg5: memref<32x1xf32, #tpu.memory_space<vmem>>, %arg6: memref<32x1xf32, #tpu.memory_space<vmem>>, %arg7: memref<32x32xf32, #tpu.memory_space<vmem>>, %arg8: memref<1x32xf32, #tpu.memory_space<vmem>>, %arg9: memref<32x32xf32, #tpu.memory_space<vmem>>, %arg10: memref<1x32xf32, #tpu.memory_space<vmem>>, %arg11: memref<1x1x32xf32, #tpu.memory_space<vmem>>) attributes {dimension_semantics = [#tpu.dimension_semantics<parallel>], iteration_bounds = array<i64: 2>, scalar_prefetch = 1 : i64, scratch_operands = 0 : i64, tpu.core_type = #tpu.core_type<tc>, window_params = [{transform_indices = @transform_0, window_bounds = array<i64: 1, 1, 32>}, {pipeline_mode = #tpu.pipeline_mode<synchronous>, transform_indices = @transform_1, window_bounds = array<i64: 52, 16>}, {pipeline_mode = #tpu.pipeline_mode<synchronous>, transform_indices = @transform_2, window_bounds = array<i64: 16, 32>}, {pipeline_mode = #tpu.pipeline_mode<synchronous>, transform_indices = @transform_3, window_bounds = array<i64: 32, 1>}, {pipeline_mode = #tpu.pipeline_mode<synchronous>, transform_indices = @transform_4, window_bounds = array<i64: 32, 1>}, {pipeline_mode = #tpu.pipeline_mode<synchronous>, transform_indices = @transform_5, window_bounds = array<i64: 32, 32>}, {pipeline_mode = #tpu.pipeline_mode<synchronous>, transform_indices = @transform_6, window_bounds = array<i64: 1, 32>}, {pipeline_mode = #tpu.pipeline_mode<synchronous>, transform_indices = @transform_7, window_bounds = array<i64: 32, 32>}, {pipeline_mode = #tpu.pipeline_mode<synchronous>, transform_indices = @transform_8, window_bounds = array<i64: 1, 32>}, {transform_indices = @transform_9, window_bounds = array<i64: 1, 1, 32>}]} {
    %c0 = arith.constant 0 : index
    %c0_0 = arith.constant 0 : index
    %c0_1 = arith.constant 0 : index
    %0 = vector.load %arg2[%c0, %c0_0, %c0_1] : memref<1x1x32xf32, #tpu.memory_space<vmem>>, vector<1x1x32xf32>
    %1 = vector.shape_cast %0 : vector<1x1x32xf32> to vector<1x32xf32>
    %cst = arith.constant 0.000000e+00 : f32
    %2 = vector.broadcast %cst : f32 to vector<1x16xf32>
    %c8_i32 = arith.constant 8 : i32
    %c0_i32 = arith.constant 0 : i32
    %c8_i32_2 = arith.constant 8 : i32
    %3 = arith.addi %c0_i32, %c8_i32_2 : i32
    %c1_i32 = arith.constant 1 : i32
    %4:2 = scf.for %arg12 = %c0_i32 to %3 step %c1_i32 iter_args(%arg13 = %2, %arg14 = %c8_i32) -> (vector<1x16xf32>, i32)  : i32 {
      %42 = arith.index_cast %arg0 : i32 to index
      %43 = arith.index_cast %arg12 : i32 to index
      %44 = memref.load %arg1[%42, %43] : memref<2x8xi32, #tpu.memory_space<smem>>
      %45 = arith.index_cast %44 : i32 to index
      %c0_28 = arith.constant 0 : index
      %46 = vector.load %arg3[%45, %c0_28] : memref<52x16xf32, #tpu.memory_space<vmem>>, vector<1x16xf32>
      %47 = arith.addf %arg13, %46 : vector<1x16xf32>
      %c0_i32_29 = arith.constant 0 : i32
      %48 = arith.cmpi eq, %44, %c0_i32_29 : i32
      %c8_i32_30 = arith.constant 8 : i32
      %49 = arith.select %48, %arg12, %c8_i32_30 : i32
      %50 = arith.minsi %arg14, %49 : i32
      scf.yield %47, %50 : vector<1x16xf32>, i32
    }
    %c8_i32_3 = arith.constant 8 : i32
    %5 = arith.sitofp %4#1 : i32 to f32
    %cst_4 = arith.constant 1.000000e+00 : f32
    %6 = arith.divf %cst_4, %5 : f32
    %7 = vector.broadcast %6 : f32 to vector<1x16xf32>
    %8 = arith.mulf %4#0, %7 : vector<1x16xf32>
    %c0_5 = arith.constant 0 : index
    %c0_6 = arith.constant 0 : index
    %9 = vector.load %arg5[%c0_5, %c0_6] : memref<32x1xf32, #tpu.memory_space<vmem>>, vector<32x1xf32>
    %10 = vector.broadcast %9 : vector<32x1xf32> to vector<32x16xf32>
    %11 = vector.broadcast %8 : vector<1x16xf32> to vector<32x16xf32>
    %12 = arith.mulf %10, %11 : vector<32x16xf32>
    %c0_7 = arith.constant 0 : index
    %c0_8 = arith.constant 0 : index
    %13 = vector.load %arg6[%c0_7, %c0_8] : memref<32x1xf32, #tpu.memory_space<vmem>>, vector<32x1xf32>
    %14 = vector.broadcast %13 : vector<32x1xf32> to vector<32x16xf32>
    %15 = arith.addf %12, %14 : vector<32x16xf32>
    %16 = math.tanh %15 : vector<32x16xf32>
    %c0_9 = arith.constant 0 : index
    %c0_10 = arith.constant 0 : index
    %17 = vector.load %arg7[%c0_9, %c0_10] : memref<32x32xf32, #tpu.memory_space<vmem>>, vector<32x32xf32>
    %cst_11 = arith.constant dense<0.000000e+00> : vector<1x32xf32>
    %18 = tpu.matmul %1, %17, %cst_11 {dimension_numbers = #tpu.dot_dimension_numbers<[1], [0], [0], [1], [0, 0, 1, 1], [], []>} : vector<1x32xf32>, vector<32x32xf32>, vector<1x32xf32> -> vector<1x32xf32>
    %c0_12 = arith.constant 0 : index
    %c0_13 = arith.constant 0 : index
    %19 = vector.load %arg8[%c0_12, %c0_13] : memref<1x32xf32, #tpu.memory_space<vmem>>, vector<1x32xf32>
    %20 = arith.addf %18, %19 : vector<1x32xf32>
    %21 = math.tanh %20 : vector<1x32xf32>
    %cst_14 = arith.constant dense<0.000000e+00> : vector<1x16xf32>
    %22 = tpu.matmul %21, %16, %cst_14 {dimension_numbers = #tpu.dot_dimension_numbers<[1], [0], [0], [1], [0, 0, 1, 1], [], []>} : vector<1x32xf32>, vector<32x16xf32>, vector<1x16xf32> -> vector<1x16xf32>
    %cst_15 = arith.constant dense<0xFF800000> : vector<1xf32>
    %23 = vector.multi_reduction <maximumf>, %22, %cst_15 [1] : vector<1x16xf32> to vector<1xf32>
    %24 = vector.shape_cast %23 : vector<1xf32> to vector<1x1xf32>
    %25 = vector.broadcast %24 : vector<1x1xf32> to vector<1x16xf32>
    %26 = arith.subf %22, %25 : vector<1x16xf32>
    %27 = math.exp %26 : vector<1x16xf32>
    %cst_16 = arith.constant dense<0.000000e+00> : vector<1xf32>
    %28 = vector.multi_reduction <add>, %27, %cst_16 [1] : vector<1x16xf32> to vector<1xf32>
    %29 = vector.shape_cast %28 : vector<1xf32> to vector<1x1xf32>
    %30 = tpu.reciprocal %29 {approx = true} : vector<1x1xf32> -> vector<1x1xf32>
    %31 = vector.broadcast %30 : vector<1x1xf32> to vector<1x16xf32>
    %32 = arith.mulf %27, %31 : vector<1x16xf32>
    %c0_17 = arith.constant 0 : index
    %c0_18 = arith.constant 0 : index
    %33 = vector.load %arg4[%c0_17, %c0_18] : memref<16x32xf32, #tpu.memory_space<vmem>>, vector<16x32xf32>
    %cst_19 = arith.constant dense<0.000000e+00> : vector<1x32xf32>
    %34 = tpu.matmul %32, %33, %cst_19 {dimension_numbers = #tpu.dot_dimension_numbers<[1], [0], [0], [1], [0, 0, 1, 1], [], []>} : vector<1x16xf32>, vector<16x32xf32>, vector<1x32xf32> -> vector<1x32xf32>
    %c0_20 = arith.constant 0 : index
    %c0_21 = arith.constant 0 : index
    %35 = vector.load %arg9[%c0_20, %c0_21] : memref<32x32xf32, #tpu.memory_space<vmem>>, vector<32x32xf32>
    %cst_22 = arith.constant dense<0.000000e+00> : vector<1x32xf32>
    %36 = tpu.matmul %34, %35, %cst_22 {dimension_numbers = #tpu.dot_dimension_numbers<[1], [0], [0], [1], [0, 0, 1, 1], [], []>} : vector<1x32xf32>, vector<32x32xf32>, vector<1x32xf32> -> vector<1x32xf32>
    %c0_23 = arith.constant 0 : index
    %c0_24 = arith.constant 0 : index
    %37 = vector.load %arg10[%c0_23, %c0_24] : memref<1x32xf32, #tpu.memory_space<vmem>>, vector<1x32xf32>
    %38 = arith.addf %36, %37 : vector<1x32xf32>
    %39 = arith.addf %38, %1 : vector<1x32xf32>
    %40 = vector.shape_cast %39 : vector<1x32xf32> to vector<1x1x32xf32>
    %c0_25 = arith.constant 0 : index
    %c0_26 = arith.constant 0 : index
    %c0_27 = arith.constant 0 : index
    %41 = vector.load %arg11[%c0_25, %c0_26, %c0_27] : memref<1x1x32xf32, #tpu.memory_space<vmem>>, vector<1x1x32xf32>
    tpu.vector_store %arg11[%c0_25, %c0_26, %c0_27], %40 {strides = array<i32>} : memref<1x1x32xf32, #tpu.memory_space<vmem>>, vector<1x1x32xf32>,
    return
  }
  func.func @transform_0(%arg0: i32, %arg1: memref<2x8xi32, #tpu.memory_space<smem>>) -> (i32, i32, i32) {
    %c0_i32 = arith.constant 0 : i32
    %c0_i32_0 = arith.constant 0 : i32
    %c0_i32_1 = arith.constant 0 : i32
    return %arg0, %c0_i32, %c0_i32_0 : i32, i32, i32
  }
  func.func @transform_1(%arg0: i32, %arg1: memref<2x8xi32, #tpu.memory_space<smem>>) -> (i32, i32) {
    %c0_i32 = arith.constant 0 : i32
    %c0_i32_0 = arith.constant 0 : i32
    %c0_i32_1 = arith.constant 0 : i32
    return %c0_i32, %c0_i32_0 : i32, i32
  }
  func.func @transform_2(%arg0: i32, %arg1: memref<2x8xi32, #tpu.memory_space<smem>>) -> (i32, i32) {
    %c0_i32 = arith.constant 0 : i32
    %c0_i32_0 = arith.constant 0 : i32
    %c0_i32_1 = arith.constant 0 : i32
    return %c0_i32, %c0_i32_0 : i32, i32
  }
  func.func @transform_3(%arg0: i32, %arg1: memref<2x8xi32, #tpu.memory_space<smem>>) -> (i32, i32) {
    %c0_i32 = arith.constant 0 : i32
    %c0_i32_0 = arith.constant 0 : i32
    %c0_i32_1 = arith.constant 0 : i32
    return %c0_i32, %c0_i32_0 : i32, i32
  }
  func.func @transform_4(%arg0: i32, %arg1: memref<2x8xi32, #tpu.memory_space<smem>>) -> (i32, i32) {
    %c0_i32 = arith.constant 0 : i32
    %c0_i32_0 = arith.constant 0 : i32
    %c0_i32_1 = arith.constant 0 : i32
    return %c0_i32, %c0_i32_0 : i32, i32
  }
  func.func @transform_5(%arg0: i32, %arg1: memref<2x8xi32, #tpu.memory_space<smem>>) -> (i32, i32) {
    %c0_i32 = arith.constant 0 : i32
    %c0_i32_0 = arith.constant 0 : i32
    %c0_i32_1 = arith.constant 0 : i32
    return %c0_i32, %c0_i32_0 : i32, i32
  }
  func.func @transform_6(%arg0: i32, %arg1: memref<2x8xi32, #tpu.memory_space<smem>>) -> (i32, i32) {
    %c0_i32 = arith.constant 0 : i32
    %c0_i32_0 = arith.constant 0 : i32
    %c0_i32_1 = arith.constant 0 : i32
    return %c0_i32, %c0_i32_0 : i32, i32
  }
  func.func @transform_7(%arg0: i32, %arg1: memref<2x8xi32, #tpu.memory_space<smem>>) -> (i32, i32) {
    %c0_i32 = arith.constant 0 : i32
    %c0_i32_0 = arith.constant 0 : i32
    %c0_i32_1 = arith.constant 0 : i32
    return %c0_i32, %c0_i32_0 : i32, i32
  }
  func.func @transform_8(%arg0: i32, %arg1: memref<2x8xi32, #tpu.memory_space<smem>>) -> (i32, i32) {
    %c0_i32 = arith.constant 0 : i32
    %c0_i32_0 = arith.constant 0 : i32
    %c0_i32_1 = arith.constant 0 : i32
    return %c0_i32, %c0_i32_0 : i32, i32
  }
  func.func @transform_9(%arg0: i32, %arg1: memref<2x8xi32, #tpu.memory_space<smem>>) -> (i32, i32, i32) {
    %c0_i32 = arith.constant 0 : i32
    %c0_i32_0 = arith.constant 0 : i32
    %c0_i32_1 = arith.constant 0 : i32
    return %arg0, %c0_i32, %c0_i32_0 : i32, i32, i32
  }
}

</mosaic_0001>

<llo_original>
// kernel: tpu_custom_call.1
$region0: #{tpu_custom_call.1}
  #allocation0 [shape = 'u32[]', space=smem, size = 0x4, offset = 0x4, fixed_abs, tag = 'smem constant byte address 0x4 - core index']
  #allocation1 [shape = 'u32[144,128]{1,0:T(1,128)}', space=vmem, size = 0x12000, scoped, tag = 'internal scratch']
  #allocation2 [shape = 's32[1]{0}', space=sflag, size = 0x4, scoped, tag = 'scoped memory for tpu_custom_call.1']
  #allocation3 [shape = 'u8[1024]{0}', space=smem, size = 0x400, scoped, tag = 'prefetched SMEM operand 0']
  %s0 = inlined_call_operand.vmem [shape: s32[2,8], index: 0, kind: input, shape index: {}]
  %s1 = inlined_call_operand.vmem [shape: f32[2,1,32], index: 1, kind: input, shape index: {}]
  %s2 = inlined_call_operand.vmem [shape: f32[52,16], index: 2, kind: input, shape index: {}]
  %s3 = inlined_call_operand.vmem [shape: f32[16,32], index: 3, kind: input, shape index: {}]
  %s4 = inlined_call_operand.vmem [shape: f32[32,1], index: 4, kind: input, shape index: {}]
  %s5 = inlined_call_operand.vmem [shape: f32[32,1], index: 5, kind: input, shape index: {}]
  %s6 = inlined_call_operand.vmem [shape: f32[32,32], index: 6, kind: input, shape index: {}]
  %s7 = inlined_call_operand.vmem [shape: f32[1,32], index: 7, kind: input, shape index: {}]
  %s8 = inlined_call_operand.vmem [shape: f32[32,32], index: 8, kind: input, shape index: {}]
  %s9 = inlined_call_operand.vmem [shape: f32[1,32], index: 9, kind: input, shape index: {}]
  %s10 = inlined_call_operand.hbm [shape: f32[2,1,32], index: 10, kind: output, shape index: {}]
  %s11 = sld [smem:[#allocation0]]
  $region76: #{tpu_custom_call.1} parent=0
    _
  %s13 = ssub.s32 1, %s11
  %s14 = scalar_select 0, %s13, %s11
  %s15 = sshll.u32 %s0, 4
  %s16 = int_to_ptr.vmem [resolvable:$true] %s15
  %18 = dma.vmem_to_smem %s16, 32, [#allocation3], [#allocation2]
  %19 = dma.done [#allocation2], 32
  %20 = sfence
  $region1: #{tpu_custom_call.1} parent=0
    #allocation4 [shape = 'u8[1024]{0}', space=vmem, size = 0x400, scoped, tag = 'output window, operand 0']
    #allocation5 [shape = 's32[2]{0}', space=sflag, size = 0x8, scoped, tag = 'scoped memory for tpu_custom_call.1']
    %21 = vsyncpa [#allocation5], 0
    %s22 = scalar_lea.sflag [#allocation5], 1
    %23 = vsyncpa %s22, 0
    loop: start=0, step=1, limit=4
    $region2: #{tpu_custom_call.1} parent=1 // loop_pre_header
      _
    $region3: #{tpu_custom_call.1} parent=1 // loop_header
      %s25 = sphi 0, %s29
      %p26 = scmp.ge.s32.totalorder %s25, 4
      %s35 = sphi 0, %s37
      %s38 = sphi 0, %s35
      %s39 = sphi 0, %s38
      %s55 = sphi 0, %s39
      %s59 = sphi 0, %s59
      %s61 = sphi 0, %s59
      %s62 = sphi 0, %s61
      %s76 = sphi 0, %s62
      %s80 = sphi 0, %s80
      %s82 = sphi 0, %s80
      %s83 = sphi 0, %s82
      %s97 = sphi 0, %s83
      %s101 = sphi 0, %s101
      %s103 = sphi 0, %s101
      %s104 = sphi 0, %s103
      %s118 = sphi 0, %s104
      %s122 = sphi 0, %s122
      %s124 = sphi 0, %s122
      %s125 = sphi 0, %s124
      %s139 = sphi 0, %s125
      %s143 = sphi 0, %s143
      %s145 = sphi 0, %s143
      %s146 = sphi 0, %s145
      %s160 = sphi 0, %s146
      %s164 = sphi 0, %s164
      %s166 = sphi 0, %s164
      %s167 = sphi 0, %s166
      %s181 = sphi 0, %s167
      %s185 = sphi 0, %s185
      %s187 = sphi 0, %s185
      %s188 = sphi 0, %s187
      %s202 = sphi 0, %s188
      %s206 = sphi 0, %s206
      %s208 = sphi 0, %s206
      %s209 = sphi 0, %s208
      %s223 = sphi 0, %s209
      %s229 = sphi 0, %s231
      %s232 = sphi 0, %s229
      %s233 = sphi 0, %s232
      %s249 = sphi 0, %s233
    $region4: #{tpu_custom_call.1} parent=1 // loop_header_branch
      %28 = sbr.rel (%p26) target = $region8
    $region5: #{tpu_custom_call.1} parent=1 // loop_body
      %s30 = ssub.s32 %s25, 1
      %s31 = ssub.s32 %s25, 2
      %s32 = sadd.s32 %s25, 1
      %s33 = ssub.s32 %s25, %s32
      %p34 = scmp.eq.s32.totalorder %s33, 0
      %s36 = sadd.s32 %s35, 1
      %s37 = scalar_select %p34, %s35, %s36
      %p40 = pneg %p34
      %p41 = scmp.eq.s32.totalorder %s25, 1
      %p42 = por %p40, %p41
      %p43 = scmp.ne.s32.totalorder %s35, %s38
      %p44 = scmp.eq.s32.totalorder %s25, 0
      %p45 = por %p43, %p44
      %p46 = scmp.ne.s32.totalorder %s35, %s38
      %p47 = scmp.eq.s32.totalorder %s30, 1
      %p48 = por %p46, %p47
      %p49 = scmp.ne.s32.totalorder %s38, %s39
      %p50 = scmp.eq.s32.totalorder %s30, 0
      %p51 = por %p49, %p50
      %p52 = scmp.ne.s32.totalorder %s38, %s39
      %p53 = scmp.eq.s32.totalorder %s31, 1
      %p54 = por %p52, %p53
      %p56 = scmp.ne.s32.totalorder %s39, %s55
      %p57 = scmp.eq.s32.totalorder %s31, 0
      %p58 = por %p56, %p57
      %s60 = sadd.s32 %s59, 1
      %p63 = scmp.eq.s32.totalorder %s25, 1
      %p64 = scmp.ne.s32.totalorder %s59, %s61
      %p65 = scmp.eq.s32.totalorder %s25, 0
      %p66 = por %p64, %p65
      %p67 = scmp.ne.s32.totalorder %s59, %s61
      %p68 = scmp.eq.s32.totalorder %s30, 1
      %p69 = por %p67, %p68
      %p70 = scmp.ne.s32.totalorder %s61, %s62
      %p71 = scmp.eq.s32.totalorder %s30, 0
      %p72 = por %p70, %p71
      %p73 = scmp.ne.s32.totalorder %s61, %s62
      %p74 = scmp.eq.s32.totalorder %s31, 1
      %p75 = por %p73, %p74
      %p77 = scmp.ne.s32.totalorder %s62, %s76
      %p78 = scmp.eq.s32.totalorder %s31, 0
      %p79 = por %p77, %p78
      %s81 = sadd.s32 %s80, 1
      %p84 = scmp.eq.s32.totalorder %s25, 1
      %p85 = scmp.ne.s32.totalorder %s80, %s82
      %p86 = scmp.eq.s32.totalorder %s25, 0
      %p87 = por %p85, %p86
      %p88 = scmp.ne.s32.totalorder %s80, %s82
      %p89 = scmp.eq.s32.totalorder %s30, 1
      %p90 = por %p88, %p89
      %p91 = scmp.ne.s32.totalorder %s82, %s83
      %p92 = scmp.eq.s32.totalorder %s30, 0
      %p93 = por %p91, %p92
      %p94 = scmp.ne.s32.totalorder %s82, %s83
      %p95 = scmp.eq.s32.totalorder %s31, 1
      %p96 = por %p94, %p95
      %p98 = scmp.ne.s32.totalorder %s83, %s97
      %p99 = scmp.eq.s32.totalorder %s31, 0
      %p100 = por %p98, %p99
      %s102 = sadd.s32 %s101, 1
      %p105 = scmp.eq.s32.totalorder %s25, 1
      %p106 = scmp.ne.s32.totalorder %s101, %s103
      %p107 = scmp.eq.s32.totalorder %s25, 0
      %p108 = por %p106, %p107
      %p109 = scmp.ne.s32.totalorder %s101, %s103
      %p110 = scmp.eq.s32.totalorder %s30, 1
      %p111 = por %p109, %p110
      %p112 = scmp.ne.s32.totalorder %s103, %s104
      %p113 = scmp.eq.s32.totalorder %s30, 0
      %p114 = por %p112, %p113
      %p115 = scmp.ne.s32.totalorder %s103, %s104
      %p116 = scmp.eq.s32.totalorder %s31, 1
      %p117 = por %p115, %p116
      %p119 = scmp.ne.s32.totalorder %s104, %s118
      %p120 = scmp.eq.s32.totalorder %s31, 0
      %p121 = por %p119, %p120
      %s123 = sadd.s32 %s122, 1
      %p126 = scmp.eq.s32.totalorder %s25, 1
      %p127 = scmp.ne.s32.totalorder %s122, %s124
      %p128 = scmp.eq.s32.totalorder %s25, 0
      %p129 = por %p127, %p128
      %p130 = scmp.ne.s32.totalorder %s122, %s124
      %p131 = scmp.eq.s32.totalorder %s30, 1
      %p132 = por %p130, %p131
      %p133 = scmp.ne.s32.totalorder %s124, %s125
      %p134 = scmp.eq.s32.totalorder %s30, 0
      %p135 = por %p133, %p134
      %p136 = scmp.ne.s32.totalorder %s124, %s125
      %p137 = scmp.eq.s32.totalorder %s31, 1
      %p138 = por %p136, %p137
      %p140 = scmp.ne.s32.totalorder %s125, %s139
      %p141 = scmp.eq.s32.totalorder %s31, 0
      %p142 = por %p140, %p141
      %s144 = sadd.s32 %s143, 1
      %p147 = scmp.eq.s32.totalorder %s25, 1
      %p148 = scmp.ne.s32.totalorder %s143, %s145
      %p149 = scmp.eq.s32.totalorder %s25, 0
      %p150 = por %p148, %p149
      %p151 = scmp.ne.s32.totalorder %s143, %s145
      %p152 = scmp.eq.s32.totalorder %s30, 1
      %p153 = por %p151, %p152
      %p154 = scmp.ne.s32.totalorder %s145, %s146
      %p155 = scmp.eq.s32.totalorder %s30, 0
      %p156 = por %p154, %p155
      %p157 = scmp.ne.s32.totalorder %s145, %s146
      %p158 = scmp.eq.s32.totalorder %s31, 1
      %p159 = por %p157, %p158
      %p161 = scmp.ne.s32.totalorder %s146, %s160
      %p162 = scmp.eq.s32.totalorder %s31, 0
      %p163 = por %p161, %p162
      %s165 = sadd.s32 %s164, 1
      %p168 = scmp.eq.s32.totalorder %s25, 1
      %p169 = scmp.ne.s32.totalorder %s164, %s166
      %p170 = scmp.eq.s32.totalorder %s25, 0
      %p171 = por %p169, %p170
      %p172 = scmp.ne.s32.totalorder %s164, %s166
      %p173 = scmp.eq.s32.totalorder %s30, 1
      %p174 = por %p172, %p173
      %p175 = scmp.ne.s32.totalorder %s166, %s167
      %p176 = scmp.eq.s32.totalorder %s30, 0
      %p177 = por %p175, %p176
      %p178 = scmp.ne.s32.totalorder %s166, %s167
      %p179 = scmp.eq.s32.totalorder %s31, 1
      %p180 = por %p178, %p179
      %p182 = scmp.ne.s32.totalorder %s167, %s181
      %p183 = scmp.eq.s32.totalorder %s31, 0
      %p184 = por %p182, %p183
      %s186 = sadd.s32 %s185, 1
      %p189 = scmp.eq.s32.totalorder %s25, 1
      %p190 = scmp.ne.s32.totalorder %s185, %s187
      %p191 = scmp.eq.s32.totalorder %s25, 0
      %p192 = por %p190, %p191
      %p193 = scmp.ne.s32.totalorder %s185, %s187
      %p194 = scmp.eq.s32.totalorder %s30, 1
      %p195 = por %p193, %p194
      %p196 = scmp.ne.s32.totalorder %s187, %s188
      %p197 = scmp.eq.s32.totalorder %s30, 0
      %p198 = por %p196, %p197
      %p199 = scmp.ne.s32.totalorder %s187, %s188
      %p200 = scmp.eq.s32.totalorder %s31, 1
      %p201 = por %p199, %p200
      %p203 = scmp.ne.s32.totalorder %s188, %s202
      %p204 = scmp.eq.s32.totalorder %s31, 0
      %p205 = por %p203, %p204
      %s207 = sadd.s32 %s206, 1
      %p210 = scmp.eq.s32.totalorder %s25, 1
      %p211 = scmp.ne.s32.totalorder %s206, %s208
      %p212 = scmp.eq.s32.totalorder %s25, 0
      %p213 = por %p211, %p212
      %p214 = scmp.ne.s32.totalorder %s206, %s208
      %p215 = scmp.eq.s32.totalorder %s30, 1
      %p216 = por %p214, %p215
      %p217 = scmp.ne.s32.totalorder %s208, %s209
      %p218 = scmp.eq.s32.totalorder %s30, 0
      %p219 = por %p217, %p218
      %p220 = scmp.ne.s32.totalorder %s208, %s209
      %p221 = scmp.eq.s32.totalorder %s31, 1
      %p222 = por %p220, %p221
      %p224 = scmp.ne.s32.totalorder %s209, %s223
      %p225 = scmp.eq.s32.totalorder %s31, 0
      %p226 = por %p224, %p225
      %s227 = ssub.s32 %s25, %s32
      %p228 = scmp.eq.s32.totalorder %s227, 0
      %s230 = sadd.s32 %s229, 1
      %s231 = scalar_select %p228, %s229, %s230
      %p234 = pneg %p228
      %p235 = scmp.eq.s32.totalorder %s25, 1
      %p236 = por %p234, %p235
      %p237 = scmp.ne.s32.totalorder %s229, %s232
      %p238 = scmp.eq.s32.totalorder %s25, 0
      %p239 = por %p237, %p238
      %p240 = scmp.ne.s32.totalorder %s229, %s232
      %p241 = scmp.eq.s32.totalorder %s30, 1
      %p242 = por %p240, %p241
      %p243 = scmp.ne.s32.totalorder %s232, %s233
      %p244 = scmp.eq.s32.totalorder %s30, 0
      %p245 = por %p243, %p244
      %p246 = scmp.ne.s32.totalorder %s232, %s233
      %p247 = scmp.eq.s32.totalorder %s31, 1
      %p248 = por %p246, %p247
      %p250 = scmp.ne.s32.totalorder %s233, %s249
      %p251 = scmp.eq.s32.totalorder %s31, 0
      %p252 = por %p250, %p251
      %p253 = scmp.le.s32.totalorder 1, %s25
      %p254 = scmp.lt.s32.totalorder %s25, 3
      %p255 = pnand %p253, %p254
      %p256 = pneg %p255
      // Predicated region
      $region9: #{tpu_custom_call.1} parent=5 // pred_check
        _
      $region10: #{tpu_custom_call.1} parent=5 // pred_check_branch
        %258 = sbr.rel (%p255) target = $region12
      $region11: #{tpu_custom_call.1} parent=5 // pred_region
        %s259 = ssub.s32 %s25, 1
        // Predicated region
        $region13: #{tpu_custom_call.1} parent=11 // pred_check
          %p260 = pneg %p72
        $region14: #{tpu_custom_call.1} parent=11 // pred_check_branch
          %262 = sbr.rel (%p260) target = $region16
        $region15: #{tpu_custom_call.1} parent=11 // pred_region
          _
        $region16: #{tpu_custom_call.1} parent=11 // pred_fallthru
          _
        // Predicated region
        $region17: #{tpu_custom_call.1} parent=11 // pred_check
          %p263 = pneg %p93
        $region18: #{tpu_custom_call.1} parent=11 // pred_check_branch
          %265 = sbr.rel (%p263) target = $region20
        $region19: #{tpu_custom_call.1} parent=11 // pred_region
          _
        $region20: #{tpu_custom_call.1} parent=11 // pred_fallthru
          _
        // Predicated region
        $region21: #{tpu_custom_call.1} parent=11 // pred_check
          %p266 = pneg %p114
        $region22: #{tpu_custom_call.1} parent=11 // pred_check_branch
          %268 = sbr.rel (%p266) target = $region24
        $region23: #{tpu_custom_call.1} parent=11 // pred_region
          _
        $region24: #{tpu_custom_call.1} parent=11 // pred_fallthru
          _
        // Predicated region
        $region25: #{tpu_custom_call.1} parent=11 // pred_check
          %p269 = pneg %p135
        $region26: #{tpu_custom_call.1} parent=11 // pred_check_branch
          %271 = sbr.rel (%p269) target = $region28
        $region27: #{tpu_custom_call.1} parent=11 // pred_region
          _
        $region28: #{tpu_custom_call.1} parent=11 // pred_fallthru
          _
        // Predicated region
        $region29: #{tpu_custom_call.1} parent=11 // pred_check
          %p272 = pneg %p156
        $region30: #{tpu_custom_call.1} parent=11 // pred_check_branch
          %274 = sbr.rel (%p272) target = $region32
        $region31: #{tpu_custom_call.1} parent=11 // pred_region
          _
        $region32: #{tpu_custom_call.1} parent=11 // pred_fallthru
          _
        // Predicated region
        $region33: #{tpu_custom_call.1} parent=11 // pred_check
          %p275 = pneg %p177
        $region34: #{tpu_custom_call.1} parent=11 // pred_check_branch
          %277 = sbr.rel (%p275) target = $region36
        $region35: #{tpu_custom_call.1} parent=11 // pred_region
          _
        $region36: #{tpu_custom_call.1} parent=11 // pred_fallthru
          _
        // Predicated region
        $region37: #{tpu_custom_call.1} parent=11 // pred_check
          %p278 = pneg %p198
        $region38: #{tpu_custom_call.1} parent=11 // pred_check_branch
          %280 = sbr.rel (%p278) target = $region40
        $region39: #{tpu_custom_call.1} parent=11 // pred_region
          _
        $region40: #{tpu_custom_call.1} parent=11 // pred_fallthru
          _
        // Predicated region
        $region41: #{tpu_custom_call.1} parent=11 // pred_check
          %p281 = pneg %p219
        $region42: #{tpu_custom_call.1} parent=11 // pred_check_branch
          %283 = sbr.rel (%p281) target = $region44
        $region43: #{tpu_custom_call.1} parent=11 // pred_region
          _
        $region44: #{tpu_custom_call.1} parent=11 // pred_fallthru
          _
      $region12: #{tpu_custom_call.1} parent=5 // pred_fallthru
        _
      %p284 = scmp.lt.s32.totalorder %s25, 2
      // Predicated region
      $region45: #{tpu_custom_call.1} parent=5 // pred_check
        %p285 = pneg %p284
      $region46: #{tpu_custom_call.1} parent=5 // pred_check_branch
        %287 = sbr.rel (%p285) target = $region48
      $region47: #{tpu_custom_call.1} parent=5 // pred_region
        // Predicated region
        $region49: #{tpu_custom_call.1} parent=47 // pred_check
          %p288 = pneg %p45
        $region50: #{tpu_custom_call.1} parent=47 // pred_check_branch
          %290 = sbr.rel (%p288) target = $region52
        $region51: #{tpu_custom_call.1} parent=47 // pred_region
          %p291 = scmp.lt.s32.totalorder %s25, 1
          %s292 = scalar_select %p291, %s25, 1
          %s293 = scalar_lea.vmem %s1, %s292
        $region52: #{tpu_custom_call.1} parent=47 // pred_fallthru
          _
      $region48: #{tpu_custom_call.1} parent=5 // pred_fallthru
        _
      %p294 = scmp.le.s32.totalorder 1, %s25
      %p295 = scmp.lt.s32.totalorder %s25, 3
      %p296 = pnand %p294, %p295
      %p297 = pneg %p296
      // Predicated region
      $region53: #{tpu_custom_call.1} parent=5 // pred_check
        _
      $region54: #{tpu_custom_call.1} parent=5 // pred_check_branch
        %299 = sbr.rel (%p296) target = $region56
      $region55: #{tpu_custom_call.1} parent=5 // pred_region
        %s300 = ssub.s32 %s25, 1
        %p301 = scmp.lt.s32.totalorder %s30, 1
        %s302 = scalar_select %p301, %s30, 1
        %s303 = scalar_lea.vmem %s1, %s302
        %p304 = pneg %p51
        %p305 = pneg %p48
        %p306 = pneg %p72
        %p307 = pneg %p69
        %p308 = pneg %p93
        %p309 = pneg %p90
        %p310 = pneg %p114
        %p311 = pneg %p111
        %p312 = pneg %p135
        %p313 = pneg %p132
        %p314 = pneg %p156
        %p315 = pneg %p153
        %p316 = pneg %p177
        %p317 = pneg %p174
        %p318 = pneg %p198
        %p319 = pneg %p195
        %p320 = pneg %p219
        %p321 = pneg %p216
        %p322 = pneg %p245
        %p323 = pneg %p242
        %s324 = sand.u32 %s232, 1
        %s325 = scalar_lea.sflag [#allocation5], %s324
        %s326 = sand.u32 %s232, 1
        %s327 = scalar_lea.vmem [#allocation4], %s326
        %p328 = scmp.lt.s32.totalorder %s30, 1
        %s329 = scalar_select %p328, %s30, 1
        %s330 = scalar_lea.vmem %s1, %s329
        %v331 = vld [vmem:[%s330] sm:$0x1]
        loop: start=0, step=1, limit=8
        $region57: #{tpu_custom_call.1} parent=55 // loop_pre_header
          _
        $region58: #{tpu_custom_call.1} parent=55 // loop_header
          %s333 = sphi 0, %s337
          %p334 = scmp.ge.s32.totalorder %s333, 8
          %v338 = vphi 0.0, %v350
          %s339 = sphi 8, %s354
        $region59: #{tpu_custom_call.1} parent=55 // loop_header_branch
          %336 = sbr.rel (%p334) target = $region63
        $region60: #{tpu_custom_call.1} parent=55 // loop_body
          %s340 = sshra.s32 %s333, 7
          %s341 = sand.u32 %s333, 127
          %s342 = sadd.s32 %s340, %s30
          %s343 = smul.u32 %s342, 128
          %s344 = sshra.s32 %s333, 7
          %s345 = sand.u32 %s333, 127
          %s346 = sadd.s32 %s343, %s345
          %s347 = sld [smem:[#allocation3 + %s346]]
          %s348 = scalar_lea.vmem %s2, %s347
          %v349 = vld [vmem:[%s348] sm:$0x1]
          %v350 = vadd.f32 %v338, %v349
          %p351 = scmp.eq.s32.totalorder %s347, 0
          %s352 = scalar_select %p351, %s333, 8
          %p353 = scmp.lt.s32.totalorder %s339, %s352
          %s354 = scalar_select %p353, %s339, %s352
        $region61: #{tpu_custom_call.1} parent=55 // loop_footer
          %s337 = sadd.s32 1, %s333
        $region62: #{tpu_custom_call.1} parent=55 // loop_footer_branch
          %332 = sbr.rel target = $region58
        $region63: #{tpu_custom_call.1} parent=55 // loop_exit
          _
        %s355 = scvt.s32.f32 %s339
        %v356 = vstv %s355
        %v357 = vrcp.pop %v356
        %s358 = vtos %v357
        %v359 = vstv %s358
        %v360 = vmul.f32 %v338, %v359
        %v361 = vld [vmem:[%s4] sm:$0xff]
        %v362 = vld [vmem:[%s4 + $0x8] sm:$0xff]
        %v363 = vld [vmem:[%s4 + $0x10] sm:$0xff]
        %v364 = vld [vmem:[%s4 + $0x18] sm:$0xff]
        %366 = vset.pattern.permute.xlu0 0
        %367 = vperm.xlu0 %366, %v361
        %v368 = vpop.permute.xlu0 %367
        %371 = vset.pattern.permute.xlu0 0
        %372 = vperm.xlu0 %371, %v362
        %v373 = vpop.permute.xlu0 %372
        %376 = vset.pattern.permute.xlu0 0
        %377 = vperm.xlu0 %376, %v363
        %v378 = vpop.permute.xlu0 %377
        %381 = vset.pattern.permute.xlu0 0
        %382 = vperm.xlu0 %381, %v364
        %v383 = vpop.permute.xlu0 %382
        %v385 = vlaneseq
        %v386 = vshrl.u32 %v385, 7
        %v387 = vsub.s32 0, %v386
        %v388 = vrot.slane %v360, %v387
        %v389 = vmul.f32 %v368, %v388
        %v390 = vmul.f32 %v373, %v388
        %v391 = vmul.f32 %v378, %v388
        %v392 = vmul.f32 %v383, %v388
        %v393 = vld [vmem:[%s5] sm:$0xff]
        %v394 = vld [vmem:[%s5 + $0x8] sm:$0xff]
        %v395 = vld [vmem:[%s5 + $0x10] sm:$0xff]
        %v396 = vld [vmem:[%s5 + $0x18] sm:$0xff]
        %398 = vset.pattern.permute.xlu0 0
        %399 = vperm.xlu0 %398, %v393
        %v400 = vpop.permute.xlu0 %399
        %403 = vset.pattern.permute.xlu0 0
        %404 = vperm.xlu0 %403, %v394
        %v405 = vpop.permute.xlu0 %404
        %408 = vset.pattern.permute.xlu0 0
        %409 = vperm.xlu0 %408, %v395
        %v410 = vpop.permute.xlu0 %409
        %413 = vset.pattern.permute.xlu0 0
        %414 = vperm.xlu0 %413, %v396
        %v415 = vpop.permute.xlu0 %414
        %v417 = vadd.f32 %v389, %v400
        %v418 = vadd.f32 %v390, %v405
        %v419 = vadd.f32 %v391, %v410
        %v420 = vadd.f32 %v392, %v415
        %v421 = vtanh.pop %v417
        %v422 = vtanh.pop %v418
        %v423 = vtanh.pop %v419
        %v424 = vtanh.pop %v420
        %v425 = vld [vmem:[%s6] sm:$0xff]
        %v426 = vld [vmem:[%s6 + $0x8] sm:$0xff]
        %v427 = vld [vmem:[%s6 + $0x10] sm:$0xff]
        %v428 = vld [vmem:[%s6 + $0x18] sm:$0xff]
        %v429 = vld [vmem:[%s7] sm:$0x1]
        %vm430 = vcmask 261120
        %v432 = vsel %vm430, %v331, 0
        %434 = vmatprep.subr.mxu0 0.0
        %435 = vmatpush1.msra.mxu0 %v425
        %436 = vmatprep.subr.mxu0 0.0
        %437 = vmatpush1.msra.mxu0 %v426
        %438 = vmatprep.subr.mxu0 0.0
        %439 = vmatpush1.msra.mxu0 %v427
        %440 = vmatprep.subr.mxu0 0.0
        %441 = vmatpush1.msra.mxu0 %v428
        %442 = vmatprep.subr.mxu0 0.0
        %443 = vmatpush1.msra.mxu0 0.0
        %444 = vmatprep.subr.mxu0 0.0
        %445 = vmatpush1.msra.mxu0 0.0
        %446 = vmatprep.subr.mxu0 0.0
        %447 = vmatpush1.msra.mxu0 0.0
        %448 = vmatprep.subr.mxu0 0.0
        %449 = vmatpush1.msra.mxu0 0.0
        %450 = vmatprep.subr.mxu0 0.0
        %451 = vmatpush1.msra.mxu0 0.0
        %452 = vmatprep.subr.mxu0 0.0
        %453 = vmatpush1.msra.mxu0 0.0
        %454 = vmatprep.subr.mxu0 0.0
        %455 = vmatpush1.msra.mxu0 0.0
        %456 = vmatprep.subr.mxu0 0.0
        %457 = vmatpush1.msra.mxu0 0.0
        %458 = vmatprep.subr.mxu0 0.0
        %459 = vmatpush1.msra.mxu0 0.0
        %460 = vmatprep.subr.mxu0 0.0
        %461 = vmatpush1.msra.mxu0 0.0
        %462 = vmatprep.subr.mxu0 0.0
        %463 = vmatpush1.msra.mxu0 0.0
        %464 = vmatprep.subr.mxu0 0.0
        %465 = vmatpush1.msra.mxu0 0.0
        %466 = vmatprep.subr.mxu0 0.0
        %467 = vmatpush1.msra.mxu0 0.0
        %468 = vmatprep.subr.mxu0 0.0
        %469 = vmatpush1.msra.mxu0 0.0
        %470 = vmatprep.subr.mxu0 0.0
        %471 = vmatpush1.msra.mxu0 0.0
        %472 = vmatprep.subr.mxu0 0.0
        %473 = vmatpush1.msra.mxu0 0.0
        %474 = vmatprep.subr.mxu0 0.0
        %475 = vmatpush1.msra.mxu0 0.0
        %476 = vmatprep.subr.mxu0 0.0
        %477 = vmatpush1.msra.mxu0 0.0
        %478 = vmatprep.subr.mxu0 0.0
        %479 = vmatpush1.msra.mxu0 0.0
        %480 = vmatprep.subr.mxu0 0.0
        %481 = vmatpush1.msra.mxu0 0.0
        %482 = vmatprep.subr.mxu0 0.0
        %483 = vmatpush1.msra.mxu0 0.0
        %484 = vmatprep.subr.mxu0 0.0
        %485 = vmatpush1.msra.mxu0 0.0
        %486 = vmatprep.subr.mxu0 0.0
        %487 = vmatpush1.msra.mxu0 0.0
        %488 = vmatprep.subr.mxu0 0.0
        %489 = vmatpush1.msra.mxu0 0.0
        %490 = vmatprep.subr.mxu0 0.0
        %491 = vmatpush1.msra.mxu0 0.0
        %492 = vmatprep.subr.mxu0 0.0
        %493 = vmatpush1.msra.mxu0 0.0
        %494 = vmatprep.subr.mxu0 0.0
        %495 = vmatpush1.msra.mxu0 0.0
        %496 = vmatprep.subr.mxu0 0.0
        %497 = vmatpush1.msra.mxu0 0.0
        %498 = vmatprep.mubr.f32.mxu0 0.0
        %499 = vmatmul.mubr.f32.gmra.mrb[0].mxu0 %v432
        %v500 = vpop.f32.mrb[0].mxu0
        %v501 = vadd.f32 %v429, %v500
        %v502 = vpop.f32.mrb[0].mxu0
        %503 = vdwg.mxu0
        %v504 = vtanh.pop %v501
        %v506 = vsel %vm430, %v504, 0
        %508 = vmatprep.subr.mxu0 0.0
        %509 = vmatpush1.msra.mxu0 %v421
        %510 = vmatprep.subr.mxu0 0.0
        %511 = vmatpush1.msra.mxu0 %v422
        %512 = vmatprep.subr.mxu0 0.0
        %513 = vmatpush1.msra.mxu0 %v423
        %514 = vmatprep.subr.mxu0 0.0
        %515 = vmatpush1.msra.mxu0 %v424
        %516 = vmatprep.subr.mxu0 0.0
        %517 = vmatpush1.msra.mxu0 0.0
        %518 = vmatprep.subr.mxu0 0.0
        %519 = vmatpush1.msra.mxu0 0.0
        %520 = vmatprep.subr.mxu0 0.0
        %521 = vmatpush1.msra.mxu0 0.0
        %522 = vmatprep.subr.mxu0 0.0
        %523 = vmatpush1.msra.mxu0 0.0
        %524 = vmatprep.subr.mxu0 0.0
        %525 = vmatpush1.msra.mxu0 0.0
        %526 = vmatprep.subr.mxu0 0.0
        %527 = vmatpush1.msra.mxu0 0.0
        %528 = vmatprep.subr.mxu0 0.0
        %529 = vmatpush1.msra.mxu0 0.0
        %530 = vmatprep.subr.mxu0 0.0
        %531 = vmatpush1.msra.mxu0 0.0
        %532 = vmatprep.subr.mxu0 0.0
        %533 = vmatpush1.msra.mxu0 0.0
        %534 = vmatprep.subr.mxu0 0.0
        %535 = vmatpush1.msra.mxu0 0.0
        %536 = vmatprep.subr.mxu0 0.0
        %537 = vmatpush1.msra.mxu0 0.0
        %538 = vmatprep.subr.mxu0 0.0
        %539 = vmatpush1.msra.mxu0 0.0
        %540 = vmatprep.subr.mxu0 0.0
        %541 = vmatpush1.msra.mxu0 0.0
        %542 = vmatprep.subr.mxu0 0.0
        %543 = vmatpush1.msra.mxu0 0.0
        %544 = vmatprep.subr.mxu0 0.0
        %545 = vmatpush1.msra.mxu0 0.0
        %546 = vmatprep.subr.mxu0 0.0
        %547 = vmatpush1.msra.mxu0 0.0
        %548 = vmatprep.subr.mxu0 0.0
        %549 = vmatpush1.msra.mxu0 0.0
        %550 = vmatprep.subr.mxu0 0.0
        %551 = vmatpush1.msra.mxu0 0.0
        %552 = vmatprep.subr.mxu0 0.0
        %553 = vmatpush1.msra.mxu0 0.0
        %554 = vmatprep.subr.mxu0 0.0
        %555 = vmatpush1.msra.mxu0 0.0
        %556 = vmatprep.subr.mxu0 0.0
        %557 = vmatpush1.msra.mxu0 0.0
        %558 = vmatprep.subr.mxu0 0.0
        %559 = vmatpush1.msra.mxu0 0.0
        %560 = vmatprep.subr.mxu0 0.0
        %561 = vmatpush1.msra.mxu0 0.0
        %562 = vmatprep.subr.mxu0 0.0
        %563 = vmatpush1.msra.mxu0 0.0
        %564 = vmatprep.subr.mxu0 0.0
        %565 = vmatpush1.msra.mxu0 0.0
        %566 = vmatprep.subr.mxu0 0.0
        %567 = vmatpush1.msra.mxu0 0.0
        %568 = vmatprep.subr.mxu0 0.0
        %569 = vmatpush1.msra.mxu0 0.0
        %570 = vmatprep.subr.mxu0 0.0
        %571 = vmatpush1.msra.mxu0 0.0
        %572 = vmatprep.mubr.f32.mxu0 0.0
        %573 = vmatmul.mubr.f32.gmra.mrb[0].mxu0 %v506
        %v574 = vpop.f32.mrb[0].mxu0
        %v575 = vadd.f32 0.0, %v574
        %v576 = vpop.f32.mrb[0].mxu0
        %577 = vdwg.mxu0
        %vm578 = vcmask 122880
        %v579 = vsel %vm578, %v575, -inf
        %580 = vmax.xlane.f32.xlu0 %v579
        %v581 = vpop.xlane.xlu0 %580
        %v582 = vsub.f32 %v575, %v581
        %v583 = vmul.f32 %v582, 1.442695
        %v584 = vpow.pop %v583
        %v585 = vsel %vm578, %v584, 0.0
        %586 = vadd.xlane.f32.xlu0 %v585
        %v587 = vpop.xlane.xlu0 %586
        %v588 = vrcp.pop %v587
        %v589 = vmul.f32 %v584, %v588
        %v590 = vld [vmem:[%s3] sm:$0xff]
        %v591 = vld [vmem:[%s3 + $0x8] sm:$0xff]
        %vm592 = vcmask 130048
        %v594 = vsel %vm592, %v589, 0
        %596 = vmatprep.subr.mxu0 0.0
        %597 = vmatpush1.msra.mxu0 %v590
        %598 = vmatprep.subr.mxu0 0.0
        %599 = vmatpush1.msra.mxu0 %v591
        %600 = vmatprep.subr.mxu0 0.0
        %601 = vmatpush1.msra.mxu0 0.0
        %602 = vmatprep.subr.mxu0 0.0
        %603 = vmatpush1.msra.mxu0 0.0
        %604 = vmatprep.subr.mxu0 0.0
        %605 = vmatpush1.msra.mxu0 0.0
        %606 = vmatprep.subr.mxu0 0.0
        %607 = vmatpush1.msra.mxu0 0.0
        %608 = vmatprep.subr.mxu0 0.0
        %609 = vmatpush1.msra.mxu0 0.0
        %610 = vmatprep.subr.mxu0 0.0
        %611 = vmatpush1.msra.mxu0 0.0
        %612 = vmatprep.subr.mxu0 0.0
        %613 = vmatpush1.msra.mxu0 0.0
        %614 = vmatprep.subr.mxu0 0.0
        %615 = vmatpush1.msra.mxu0 0.0
        %616 = vmatprep.subr.mxu0 0.0
        %617 = vmatpush1.msra.mxu0 0.0
        %618 = vmatprep.subr.mxu0 0.0
        %619 = vmatpush1.msra.mxu0 0.0
        %620 = vmatprep.subr.mxu0 0.0
        %621 = vmatpush1.msra.mxu0 0.0
        %622 = vmatprep.subr.mxu0 0.0
        %623 = vmatpush1.msra.mxu0 0.0
        %624 = vmatprep.subr.mxu0 0.0
        %625 = vmatpush1.msra.mxu0 0.0
        %626 = vmatprep.subr.mxu0 0.0
        %627 = vmatpush1.msra.mxu0 0.0
        %628 = vmatprep.subr.mxu0 0.0
        %629 = vmatpush1.msra.mxu0 0.0
        %630 = vmatprep.subr.mxu0 0.0
        %631 = vmatpush1.msra.mxu0 0.0
        %632 = vmatprep.subr.mxu0 0.0
        %633 = vmatpush1.msra.mxu0 0.0
        %634 = vmatprep.subr.mxu0 0.0
        %635 = vmatpush1.msra.mxu0 0.0
        %636 = vmatprep.subr.mxu0 0.0
        %637 = vmatpush1.msra.mxu0 0.0
        %638 = vmatprep.subr.mxu0 0.0
        %639 = vmatpush1.msra.mxu0 0.0
        %640 = vmatprep.subr.mxu0 0.0
        %641 = vmatpush1.msra.mxu0 0.0
        %642 = vmatprep.subr.mxu0 0.0
        %643 = vmatpush1.msra.mxu0 0.0
        %644 = vmatprep.subr.mxu0 0.0
        %645 = vmatpush1.msra.mxu0 0.0
        %646 = vmatprep.subr.mxu0 0.0
        %647 = vmatpush1.msra.mxu0 0.0
        %648 = vmatprep.subr.mxu0 0.0
        %649 = vmatpush1.msra.mxu0 0.0
        %650 = vmatprep.subr.mxu0 0.0
        %651 = vmatpush1.msra.mxu0 0.0
        %652 = vmatprep.subr.mxu0 0.0
        %653 = vmatpush1.msra.mxu0 0.0
        %654 = vmatprep.subr.mxu0 0.0
        %655 = vmatpush1.msra.mxu0 0.0
        %656 = vmatprep.subr.mxu0 0.0
        %657 = vmatpush1.msra.mxu0 0.0
        %658 = vmatprep.subr.mxu0 0.0
        %659 = vmatpush1.msra.mxu0 0.0
        %660 = vmatprep.mubr.f32.mxu0 0.0
        %661 = vmatmul.mubr.f32.gmra.mrb[0].mxu0 %v594
        %v662 = vpop.f32.mrb[0].mxu0
        %v663 = vadd.f32 0.0, %v662
        %v664 = vpop.f32.mrb[0].mxu0
        %665 = vdwg.mxu0
        %v666 = vld [vmem:[%s8] sm:$0xff]
        %v667 = vld [vmem:[%s8 + $0x8] sm:$0xff]
        %v668 = vld [vmem:[%s8 + $0x10] sm:$0xff]
        %v669 = vld [vmem:[%s8 + $0x18] sm:$0xff]
        %v670 = vld [vmem:[%s9] sm:$0x1]
        %v672 = vsel %vm430, %v663, 0
        %674 = vmatprep.subr.mxu0 0.0
        %675 = vmatpush1.msra.mxu0 %v666
        %676 = vmatprep.subr.mxu0 0.0
        %677 = vmatpush1.msra.mxu0 %v667
        %678 = vmatprep.subr.mxu0 0.0
        %679 = vmatpush1.msra.mxu0 %v668
        %680 = vmatprep.subr.mxu0 0.0
        %681 = vmatpush1.msra.mxu0 %v669
        %682 = vmatprep.subr.mxu0 0.0
        %683 = vmatpush1.msra.mxu0 0.0
        %684 = vmatprep.subr.mxu0 0.0
        %685 = vmatpush1.msra.mxu0 0.0
        %686 = vmatprep.subr.mxu0 0.0
        %687 = vmatpush1.msra.mxu0 0.0
        %688 = vmatprep.subr.mxu0 0.0
        %689 = vmatpush1.msra.mxu0 0.0
        %690 = vmatprep.subr.mxu0 0.0
        %691 = vmatpush1.msra.mxu0 0.0
        %692 = vmatprep.subr.mxu0 0.0
        %693 = vmatpush1.msra.mxu0 0.0
        %694 = vmatprep.subr.mxu0 0.0
        %695 = vmatpush1.msra.mxu0 0.0
        %696 = vmatprep.subr.mxu0 0.0
        %697 = vmatpush1.msra.mxu0 0.0
        %698 = vmatprep.subr.mxu0 0.0
        %699 = vmatpush1.msra.mxu0 0.0
        %700 = vmatprep.subr.mxu0 0.0
        %701 = vmatpush1.msra.mxu0 0.0
        %702 = vmatprep.subr.mxu0 0.0
        %703 = vmatpush1.msra.mxu0 0.0
        %704 = vmatprep.subr.mxu0 0.0
        %705 = vmatpush1.msra.mxu0 0.0
        %706 = vmatprep.subr.mxu0 0.0
        %707 = vmatpush1.msra.mxu0 0.0
        %708 = vmatprep.subr.mxu0 0.0
        %709 = vmatpush1.msra.mxu0 0.0
        %710 = vmatprep.subr.mxu0 0.0
        %711 = vmatpush1.msra.mxu0 0.0
        %712 = vmatprep.subr.mxu0 0.0
        %713 = vmatpush1.msra.mxu0 0.0
        %714 = vmatprep.subr.mxu0 0.0
        %715 = vmatpush1.msra.mxu0 0.0
        %716 = vmatprep.subr.mxu0 0.0
        %717 = vmatpush1.msra.mxu0 0.0
        %718 = vmatprep.subr.mxu0 0.0
        %719 = vmatpush1.msra.mxu0 0.0
        %720 = vmatprep.subr.mxu0 0.0
        %721 = vmatpush1.msra.mxu0 0.0
        %722 = vmatprep.subr.mxu0 0.0
        %723 = vmatpush1.msra.mxu0 0.0
        %724 = vmatprep.subr.mxu0 0.0
        %725 = vmatpush1.msra.mxu0 0.0
        %726 = vmatprep.subr.mxu0 0.0
        %727 = vmatpush1.msra.mxu0 0.0
        %728 = vmatprep.subr.mxu0 0.0
        %729 = vmatpush1.msra.mxu0 0.0
        %730 = vmatprep.subr.mxu0 0.0
        %731 = vmatpush1.msra.mxu0 0.0
        %732 = vmatprep.subr.mxu0 0.0
        %733 = vmatpush1.msra.mxu0 0.0
        %734 = vmatprep.subr.mxu0 0.0
        %735 = vmatpush1.msra.mxu0 0.0
        %736 = vmatprep.subr.mxu0 0.0
        %737 = vmatpush1.msra.mxu0 0.0
        %738 = vmatprep.mubr.f32.mxu0 0.0
        %739 = vmatmul.mubr.f32.gmra.mrb[0].mxu0 %v672
        %v740 = vpop.f32.mrb[0].mxu0
        %v741 = vadd.f32 %v670, %v740
        %v742 = vpop.f32.mrb[0].mxu0
        %743 = vdwg.mxu0
        %v744 = vadd.f32 %v741, %v331
        %vm745 = vcmask 253952
        %746 = vst.msk [vmem:[%s327] sm:$0x1] %vm745, %v744
        %s747 = sand.u32 %s232, 1
        %s748 = scalar_lea.sflag [#allocation5], %s747
        %s749 = sand.u32 %s232, 1
        %s750 = scalar_lea.vmem [#allocation4], %s749
        // Predicated region
        $region64: #{tpu_custom_call.1} parent=55 // pred_check
          %p751 = pneg %p242
        $region65: #{tpu_custom_call.1} parent=55 // pred_check_branch
          %753 = sbr.rel (%p751) target = $region67
        $region66: #{tpu_custom_call.1} parent=55 // pred_region
          %s755 = ssub.s32 16, 16
          %756 = vsyncadd %s748, %s755
          %s757 = smul.addr %s30, 16
          %s758 = scalar_lea.hbm %s10, %s757
          %s760 = sshll.u32 %s750, 4
          %s761 = int_to_ptr.vmem [resolvable:$true] %s760
          %763 = dma.vmem_to_hbm [thread:$0]  %s761, 16, %s758, %s748
        $region67: #{tpu_custom_call.1} parent=55 // pred_fallthru
          _
      $region56: #{tpu_custom_call.1} parent=5 // pred_fallthru
        _
      %p764 = scmp.le.s32.totalorder 2, %s25
      // Predicated region
      $region68: #{tpu_custom_call.1} parent=5 // pred_check
        %p765 = pneg %p764
      $region69: #{tpu_custom_call.1} parent=5 // pred_check_branch
        %767 = sbr.rel (%p765) target = $region71
      $region70: #{tpu_custom_call.1} parent=5 // pred_region
        %s768 = ssub.s32 %s25, 2
        // Predicated region
        $region72: #{tpu_custom_call.1} parent=70 // pred_check
          %p769 = pneg %p248
        $region73: #{tpu_custom_call.1} parent=70 // pred_check_branch
          %771 = sbr.rel (%p769) target = $region75
        $region74: #{tpu_custom_call.1} parent=70 // pred_region
          %s772 = sand.u32 %s233, 1
          %s773 = scalar_lea.sflag [#allocation5], %s772
          %s774 = sand.u32 %s233, 1
          %s775 = scalar_lea.vmem [#allocation4], %s774
          %776 = dma.done %s773, 16
        $region75: #{tpu_custom_call.1} parent=70 // pred_fallthru
          _
      $region71: #{tpu_custom_call.1} parent=5 // pred_fallthru
        _
    $region6: #{tpu_custom_call.1} parent=1 // loop_footer
      %s29 = sadd.s32 1, %s25
    $region7: #{tpu_custom_call.1} parent=1 // loop_footer_branch
      %24 = sbr.rel target = $region3
    $region8: #{tpu_custom_call.1} parent=1 // loop_exit
      _
    %777 = vsyncpa [#allocation5], 1
    %s778 = scalar_lea.sflag [#allocation5], 1
    %779 = vsyncpa %s778, 1

</llo_original>
